<compile_context>
chip_gen: v5e
topology: v5e:2x2
jax: 0.10.0
libtpu: 0.0.40
codegen_flags: <defaults>
</compile_context>

<pallas_src>
import functools
import numpy as np

import jax
import jax.numpy as jnp
from jax.experimental import pallas as pl
from jax.experimental.pallas import tpu as pltpu


# ---------------------------------------------------------------------------
# Pallas kernel: polynomial-form pairwise squared distances + both min reductions
# ---------------------------------------------------------------------------
def _symm_dist_kernel(w_ref, x_ref, d_nm_ref, d_ms_ref, basis_ref, *, M, S):
    # w_ref:  (1, M*S, 10)  per-(m,s) quadratic-polynomial coefficients
    # x_ref:  (1, 3, Nt)    point-cloud tile (coords on sublanes, points on lanes)
    # d_nm:   (1, M, Nt)    min over S, written every N tile (lane-dense)
    # d_ms:   (1, M, S)     running min over N, resident across the N grid axis
    n_idx = pl.program_id(1)

    @pl.when(n_idx == 0)
    def _init():
        d_ms_ref[...] = jnp.full(d_ms_ref.shape, jnp.inf, dtype=d_ms_ref.dtype)

    x = x_ref[0]                                   # (3, Nt)
    x0 = x[0:1, :]
    x1 = x[1:2, :]
    x2 = x[2:3, :]

    # Basis [x0^2, x1^2, x2^2, x0*x1, x0*x2, x1*x2, x0, x1, x2, 1], shared by all m.
    basis_ref[0:3, :] = x * x
    basis_ref[3:4, :] = x0 * x1
    basis_ref[4:5, :] = x0 * x2
    basis_ref[5:6, :] = x1 * x2
    basis_ref[6:9, :] = x
    basis_ref[9:10, :] = jnp.ones_like(x0)

    # One MXU matmul yields the full ||p[m,s] - R_m(x_n - t_m)||^2 tile.
    dist = jnp.dot(w_ref[0], basis_ref[...],
                   preferred_element_type=jnp.float32)          # (M*S, Nt)
    dist = jnp.maximum(dist, 0.0)   # clamp cancellation-induced tiny negatives

    for m in range(M):              # M is small and static -> unrolled
        d_m = dist[m * S:(m + 1) * S, :]                        # (S, Nt)
        d_nm_ref[0, m] = jnp.min(d_m, axis=0)                   # (Nt,)  min over S
        d_ms_ref[0, m] = jnp.minimum(d_ms_ref[0, m],
                                     jnp.min(d_m, axis=1))      # (S,)   min over N


def quaternions_to_rotation_matrices(q):
    w, x, y, z = q[..., 0], q[..., 1], q[..., 2], q[..., 3]
    n = w * w + x * x + y * y + z * z
    s = jnp.where(n > 0, 2.0 / n, 0.0)
    xx, yy, zz = s * x * x, s * y * y, s * z * z
    xy, xz, yz = s * x * y, s * x * z, s * y * z
    xw, yw, zw = s * x * w, s * y * w, s * z * w
    R = jnp.stack(
        [
            jnp.stack([1 - yy - zz, xy - zw, xz + yw], axis=-1),
            jnp.stack([xy + zw, 1 - xx - zz, yz - xw], axis=-1),
            jnp.stack([xz - yw, yz + xw, 1 - xx - yy], axis=-1),
        ],
        axis=-2,
    )
    return R  # (..., 3, 3)


def pairwise_min_dists(prim_points, pcl, translations, rotations, *, n_tile_target=512):
    """prim_points: (B, M, S, 3); pcl: (B, N, 3).

    Returns d_nm: (B, M, N) = min_S dist, d_ms: (B, M, S) = min_N dist, where
    dist[b,m,s,n] = || p[b,m,s] - R_m (x_n - t_m) ||^2.
    """
    B, M, S, _ = prim_points.shape
    N = pcl.shape[1]
    f32 = jnp.float32

    p = prim_points.astype(f32)
    t = translations.astype(f32)
    R = quaternions_to_rotation_matrices(rotations.astype(f32))        # (B,M,3,3)

    # Fold the transform into per-(m,s) polynomial coefficients over x:
    #   dist = x^T G x - 2 (G t + R^T p) . x + (|p|^2 + 2 p.R t_ + t^T G t)
    G = jnp.einsum('bmki,bmkj->bmij', R, R)                            # (B,M,3,3)
    Gt = jnp.einsum('bmij,bmj->bmi', G, t)                             # (B,M,3)
    tGt = jnp.einsum('bmi,bmi->bm', t, Gt)                             # (B,M)
    pr = jnp.einsum('bmsi,bmij->bmsj', p, R)                           # (B,M,S,3) = R^T p
    psq = jnp.sum(p * p, axis=-1)                                      # (B,M,S)
    pc = jnp.einsum('bmsj,bmj->bms', pr, t)                            # (B,M,S)

    quad = jnp.stack([G[..., 0, 0], G[..., 1, 1], G[..., 2, 2],
                      2.0 * G[..., 0, 1], 2.0 * G[..., 0, 2], 2.0 * G[..., 1, 2]],
                     axis=-1)                                          # (B,M,6)
    quad = jnp.broadcast_to(quad[:, :, None, :], (B, M, S, 6))
    lin = -2.0 * (Gt[:, :, None, :] + pr)                              # (B,M,S,3)
    const = (psq + 2.0 * pc + tGt[:, :, None])[..., None]              # (B,M,S,1)
    W = jnp.concatenate([quad, lin, const], axis=-1).reshape(B, M * S, 10).astype(f32)

    # Lane-major point cloud: coords on sublanes, points on lanes.
    x_t = jnp.transpose(pcl.astype(f32), (0, 2, 1))                    # (B, 3, N)

    lane = 128
    n_tile = min(n_tile_target, -(-N // lane) * lane)
    n_tile = max(lane, (n_tile // lane) * lane)                        # multiple of 128
    n_pad = -(-N // n_tile) * n_tile
    if n_pad != N:
        # Far-away sentinel: padded points never win the min over N (d_ms) and the
        # padded d_nm columns are sliced off below.
        x_t = jnp.pad(x_t, ((0, 0), (0, 0), (0, n_pad - N)), constant_values=1e6)

    grid = (B, n_pad // n_tile)

    d_nm, d_ms = pl.pallas_call(
        functools.partial(_symm_dist_kernel, M=M, S=S),
        out_shape=(jax.ShapeDtypeStruct((B, M, n_pad), f32),
                   jax.ShapeDtypeStruct((B, M, S), f32)),
        grid_spec=pltpu.PrefetchScalarGridSpec(
            num_scalar_prefetch=0,
            grid=grid,
            in_specs=[
                pl.BlockSpec((1, M * S, 10), lambda b, n: (b, 0, 0)),  # resident per b
                pl.BlockSpec((1, 3, n_tile), lambda b, n: (b, 0, n)),
            ],
            out_specs=[
                pl.BlockSpec((1, M, n_tile), lambda b, n: (b, 0, n)),
                pl.BlockSpec((1, M, S), lambda b, n: (b, 0, 0)),       # accumulator
            ],
            scratch_shapes=[pltpu.VMEM((10, n_tile), f32)],
        ),
        compiler_params=pltpu.CompilerParams(
            dimension_semantics=("parallel", "arbitrary")),
    )(W, x_t)
    return d_nm[:, :, :N], d_ms


# ---------------------------------------------------------------------------
# Plain-JAX geometric glue (superquadric machinery)
# ---------------------------------------------------------------------------
class Sampler:
    """Deterministic surface sampler.
    # TODO(synk): stand-in for EqualDistanceSamplerSQ (not provided in the spec)."""

    def __init__(self, n_samples):
        self.n_samples = n_samples

    def sample(self):
        S = self.n_samples
        etas = jnp.linspace(-np.pi / 2 + 0.15, np.pi / 2 - 0.15, S, dtype=jnp.float32)
        omegas = jnp.linspace(-np.pi + 0.15, np.pi - 0.15, S, dtype=jnp.float32)
        return etas, omegas


def transform_to_primitives_centric_system(X, translations, rotations):
    # X: (B, N, 3) -> (B, N, M, 3); only needed when a regularizer wants F.
    R = quaternions_to_rotation_matrices(rotations)
    Xc = X[:, :, None, :] - translations[:, None, :, :]
    return jnp.einsum("bmij,bnmj->bnmi", R, Xc)


def _fexp(x, p):
    return jnp.sign(x) * (jnp.abs(x) ** p)


def sampling_from_superquadric(size, shape, sampler):
    etas, omegas = sampler.sample()
    etas = etas[None, None, :]
    omegas = omegas[None, None, :]
    a1, a2, a3 = size[..., 0:1], size[..., 1:2], size[..., 2:3]
    e1, e2 = shape[..., 0:1], shape[..., 1:2]
    ce, se = jnp.cos(etas), jnp.sin(etas)
    co, so = jnp.cos(omegas), jnp.sin(omegas)
    x = a1 * _fexp(ce, e1) * _fexp(co, e2)
    y = a2 * _fexp(ce, e1) * _fexp(so, e2)
    z = a3 * _fexp(se, e1)
    points = jnp.stack([x, y, z], axis=-1)                           # (B, M, S, 3)
    nx = _fexp(ce, 2 - e1) * _fexp(co, 2 - e2) / a1
    ny = _fexp(ce, 2 - e1) * _fexp(so, 2 - e2) / a2
    nz = _fexp(se, 2 - e1) / a3
    normals = jnp.stack([nx, ny, nz], axis=-1)                       # (B, M, S, 3)
    return points, normals


def deform(X, size, deformations):
    # linear tapering along z; X: (B, M, S, 3)
    a3 = size[..., 2:3]
    kx = deformations[..., 0:1]
    ky = deformations[..., 1:2]
    z = X[..., 2]
    fx = kx * z / a3 + 1.0
    fy = ky * z / a3 + 1.0
    return jnp.stack([fx * X[..., 0], fy * X[..., 1], z], axis=-1)


def inside_outside_function(X, size, shape):
    # X: (B, N, M, 3) -> F: (B, N, M)
    a1 = size[..., 0][:, None, :]
    a2 = size[..., 1][:, None, :]
    a3 = size[..., 2][:, None, :]
    e1 = shape[..., 0][:, None, :]
    e2 = shape[..., 1][:, None, :]
    x, y, z = X[..., 0], X[..., 1], X[..., 2]
    F = (jnp.abs(x / a1) ** (2.0 / e2) + jnp.abs(y / a2) ** (2.0 / e2)) ** (e2 / e1) \
        + jnp.abs(z / a3) ** (2.0 / e1)
    return F


# ---------------------------------------------------------------------------
# Regularizers / embedding regularizers (zero stand-ins; structure preserved)
# ---------------------------------------------------------------------------
def get_regularizer(name, params, F, regularizer_terms):
    # TODO(synk): per-name regularizer implementations were not provided;
    # with regularizer_type=None every term is the empty-name (zero) regularizer.
    return jnp.float32(0.0)


def get_regularizer_term(params, F, regularizer_terms):
    regularizers = ['sparsity_regularizer', 'bernoulli_regularizer',
                    'entropy_bernoulli_regularizer', 'parsimony_regularizer',
                    'overlapping_regularizer', 'diversity_regularizer']
    if regularizer_terms['regularizer_type'] is None:
        regularizer_terms['regularizer_type'] = []
    return {r: get_regularizer(r if r in regularizer_terms['regularizer_type'] else '',
                               params, F, regularizer_terms)
            for r in regularizers}


def get_regularizer_weights(regularizers, regularizer_terms):
    return {
        'sparsity_regularizer': regularizers['sparsity_regularizer'] * regularizer_terms['sparsity_regularizer_weight'],
        'overlapping_regularizer': regularizers['overlapping_regularizer'] * regularizer_terms['overlapping_regularizer_weight'],
        'parsimony_regularizer': regularizers['parsimony_regularizer'] * regularizer_terms['parsimony_regularizer_weight'],
        'entropy_bernoulli_regularizer': regularizers['entropy_bernoulli_regularizer'] * regularizer_terms['entropy_bernoulli_regularizer_weight'],
        'bernoulli_regularizer': regularizers['bernoulli_regularizer'] * regularizer_terms['bernoulli_regularizer_weight'],
        'diversity_regularizer': regularizers['diversity_regularizer'] * regularizer_terms['diversity_regularizer_weight'],
    }


def emb_prim_reg(embeddings):
    # TODO(synk): emb_prim_reg was not provided in the spec; zero stand-in.
    return jnp.float32(0.0)


def emb_tran_reg(embeddings):
    # TODO(synk): emb_tran_reg was not provided in the spec; zero stand-in.
    return jnp.float32(0.0)


def emb_discrete(embeddings):
    # TODO(synk): emb_discrete was not provided in the spec; zero stand-in.
    return jnp.float32(0.0)


# ---------------------------------------------------------------------------
# Loss components (cheap O(B*N*M) / O(B*M*S) reductions in plain JAX)
# ---------------------------------------------------------------------------
def pcl_to_prim_loss(params, d_nm, pcl_transformed=None, want_inout=False):
    B, M, N = d_nm.shape
    size, shape, probs = params[2], params[3], params[5]
    F = inside_outside_function(pcl_transformed, size, shape) if want_inout else None
    dist = jnp.transpose(d_nm, (0, 2, 1))                            # (B, N, M)
    idx = jnp.argsort(dist, axis=-1)
    distance = jnp.take_along_axis(dist, idx, axis=-1)
    probs_b = jnp.broadcast_to(probs[:, None, :], (B, N, M))
    probs_sorted = jnp.take_along_axis(probs_b, idx, axis=-1)
    neg_cumprod = jnp.cumprod(1.0 - probs_sorted, axis=-1)
    neg_cumprod = jnp.concatenate(
        [jnp.ones((B, N, 1), probs_sorted.dtype), neg_cumprod[..., :-1]], axis=-1)
    minprob = probs_sorted * neg_cumprod
    loss = jnp.sum(distance * minprob) / B / N
    return loss, F


def prim_to_pcl_loss(params, d_ms):
    B, M, S = d_ms.shape
    dist = jnp.where(d_ms >= 1e30, 0.0, d_ms)
    size = params[2]
    a1, a2, a3 = size[..., 0], size[..., 1], size[..., 2]
    area = 4 * np.pi * (((a1 * a2) ** 1.6) / 3
                        + ((a1 * a3) ** 1.6) / 3
                        + ((a2 * a3) ** 1.6) / 3) ** 0.625
    area = M * area / jnp.sum(area, axis=-1, keepdims=True)
    loss = jnp.sum(jnp.mean(dist, axis=-1) * area) / B / M
    return loss


# ---------------------------------------------------------------------------
# SymmLoss forward
# ---------------------------------------------------------------------------
def symm_loss_forward(pcl, primitives, sampler, regularizer_terms, seg_lab=False):
    loss_weights = {'pcl_to_prim_weight': 1.0, 'prim_to_pcl_weight': 1.0}
    translations, rotations, size, shape, deformations, probabilities, embeddings = primitives
    B, N, _ = pcl.shape
    S = sampler.n_samples

    emb_reg = emb_prim_reg(embeddings) + 10.0 * emb_tran_reg(embeddings) + emb_discrete(embeddings)

    primitive_points, primitive_normals = sampling_from_superquadric(size, shape, sampler)  # (B,Mp,S,3)
    primitive_points = deform(primitive_points, size, deformations)
    norm = jnp.linalg.norm(primitive_normals, axis=-1, keepdims=True)
    primitive_normals = primitive_normals / norm

    # Embedding-driven symmetric assignment: argmax over the primitive axis, then
    # gather primitive points / size / shape / deformations into translation slots.
    idx = jnp.argmax(embeddings, axis=1)                                            # (B, Mt)
    primitive_points = jnp.take_along_axis(primitive_points, idx[:, :, None, None], axis=1)
    size_g = jnp.take_along_axis(size, idx[:, :, None], axis=1)
    shape_g = jnp.take_along_axis(shape, idx[:, :, None], axis=1)
    deformations_g = jnp.take_along_axis(deformations, idx[:, :, None], axis=1)
    params = [translations, rotations, size_g, shape_g, deformations_g, probabilities, embeddings]

    # Hot path: fused transform + pairwise distances + both min reductions.
    d_nm, d_ms = pairwise_min_dists(primitive_points, pcl, translations, rotations)  # (B,M,N),(B,M,S)

    # Only build the (B,N,M,3) transformed cloud / inside-outside field if a
    # regularizer actually consumes it.
    want_inout = bool(regularizer_terms.get('regularizer_type'))
    pcl_transformed = (transform_to_primitives_centric_system(pcl, translations, rotations)
                       if want_inout else None)

    pcl_to_prim, F = pcl_to_prim_loss(params, d_nm, pcl_transformed, want_inout)
    prim_to_pcl = prim_to_pcl_loss(params, d_ms)

    regularizers = get_regularizer_term(params, F, regularizer_terms)
    reg_values = get_regularizer_weights(regularizers, regularizer_terms)
    regs = sum(reg_values.values())

    w1 = loss_weights['pcl_to_prim_weight']
    w2 = loss_weights['prim_to_pcl_weight']
    total = w1 * pcl_to_prim + w2 * prim_to_pcl + regs + emb_reg
    return total, pcl_to_prim, prim_to_pcl, regs, emb_reg


# ---------------------------------------------------------------------------
if __name__ == "__main__":
    B, N, M, S = 2, 1024, 4, 32
    key = jax.random.PRNGKey(0)
    k = jax.random.split(key, 8)

    pcl = jax.random.normal(k[0], (B, N, 3), jnp.float32)
    translations = 0.5 * jax.random.normal(k[1], (B, M, 3), jnp.float32)
    quats = jax.random.normal(k[2], (B, M, 4), jnp.float32)
    rotations = quats / jnp.linalg.norm(quats, axis=-1, keepdims=True)
    size = 0.2 + 0.8 * jax.random.uniform(k[3], (B, M, 3), jnp.float32)
    shape = 0.4 + 1.2 * jax.random.uniform(k[4], (B, M, 2), jnp.float32)
    deformations = 0.2 * (jax.random.uniform(k[5], (B, M, 2), jnp.float32) - 0.5)
    probabilities = jax.random.uniform(k[6], (B, M), jnp.float32)
    embeddings = jax.random.normal(k[7], (B, M, M), jnp.float32)
    primitives = [translations, rotations, size, shape, deformations, probabilities, embeddings]

    sampler = Sampler(n_samples=S)
    regularizer_terms = {
        'regularizer_type': None,
        'sparsity_regularizer_weight': 1.0,
        'bernoulli_regularizer_weight': 1.0,
        'entropy_bernoulli_regularizer_weight': 1.0,
        'parsimony_regularizer_weight': 1.0,
        'overlapping_regularizer_weight': 1.0,
        'diversity_regularizer_weight': 1.0,
    }

    # --- correctness probe of the Pallas hot path against a pure-JAX reference ---
    pp = jax.random.normal(jax.random.PRNGKey(1), (B, M, S, 3), jnp.float32)
    d_nm, d_ms = pairwise_min_dists(pp, pcl, translations, rotations)
    q_ref = transform_to_primitives_centric_system(pcl, translations, rotations)   # (B,N,M,3)
    diff = pp[:, :, :, None, :] - jnp.transpose(q_ref, (0, 2, 1, 3))[:, :, None, :, :]
    dref = jnp.sum(diff * diff, axis=-1)                                            # (B,M,S,N)
    assert float(jnp.max(jnp.abs(d_nm - jnp.min(dref, axis=2)))) < 1e-2
    assert float(jnp.max(jnp.abs(d_ms - jnp.min(dref, axis=3)))) < 1e-2

    # --- full forward ---
    total, pcl_to_prim, prim_to_pcl, regs, emb_reg = symm_loss_forward(
        pcl, primitives, sampler, regularizer_terms, seg_lab=False)
    jax.block_until_ready(total)
    assert jnp.isfinite(total)
    print("KERNEL_OK")
</pallas_src>

<mosaic_0001>
module attributes {stable_mosaic.version = 11 : i64} {
  func.func @_symm_dist_kernel(%arg0: i32, %arg1: i32, %arg2: memref<1x128x10xf32, #tpu.memory_space<vmem>>, %arg3: memref<1x3x512xf32, #tpu.memory_space<vmem>>, %arg4: memref<1x4x512xf32, #tpu.memory_space<vmem>>, %arg5: memref<1x4x32xf32, #tpu.memory_space<vmem>>, %arg6: memref<10x512xf32, #tpu.memory_space<vmem>>) attributes {dimension_semantics = [#tpu.dimension_semantics<parallel>, #tpu.dimension_semantics<arbitrary>], iteration_bounds = array<i64: 2, 2>, scalar_prefetch = 0 : i64, scratch_operands = 1 : i64, tpu.core_type = #tpu.core_type<tc>, window_params = [{transform_indices = @transform_0, window_bounds = array<i64: 1, 128, 10>}, {transform_indices = @transform_1, window_bounds = array<i64: 1, 3, 512>}, {transform_indices = @transform_2, window_bounds = array<i64: 1, 4, 512>}, {transform_indices = @transform_3, window_bounds = array<i64: 1, 4, 32>}]} {
    %c0_i32 = arith.constant 0 : i32
    %0 = arith.cmpi eq, %arg1, %c0_i32 : i32
    %1 = arith.extui %0 : i1 to i32
    %c0_i32_0 = arith.constant 0 : i32
    %2 = arith.cmpi ne, %1, %c0_i32_0 : i32
    scf.if %2 {
      %cst_59 = arith.constant 0x7F800000 : f32
      %73 = vector.broadcast %cst_59 : f32 to vector<1x4x32xf32>
      %c0_60 = arith.constant 0 : index
      %c0_61 = arith.constant 0 : index
      %c0_62 = arith.constant 0 : index
      %74 = vector.load %arg5[%c0_60, %c0_61, %c0_62] : memref<1x4x32xf32, #tpu.memory_space<vmem>>, vector<1x4x32xf32>
      tpu.vector_store %arg5[%c0_60, %c0_61, %c0_62], %73 {strides = array<i32>} : memref<1x4x32xf32, #tpu.memory_space<vmem>>, vector<1x4x32xf32>,
    } else {
    }
    %c0 = arith.constant 0 : index
    %c0_1 = arith.constant 0 : index
    %c0_2 = arith.constant 0 : index
    %3 = vector.load %arg3[%c0, %c0_1, %c0_2] : memref<1x3x512xf32, #tpu.memory_space<vmem>>, vector<1x3x512xf32>
    %4 = vector.shape_cast %3 : vector<1x3x512xf32> to vector<3x512xf32>
    %5 = vector.extract_strided_slice %4 {offsets = [0, 0], sizes = [1, 512], strides = [1, 1]} : vector<3x512xf32> to vector<1x512xf32>
    %6 = vector.extract_strided_slice %4 {offsets = [1, 0], sizes = [1, 512], strides = [1, 1]} : vector<3x512xf32> to vector<1x512xf32>
    %7 = vector.extract_strided_slice %4 {offsets = [2, 0], sizes = [1, 512], strides = [1, 1]} : vector<3x512xf32> to vector<1x512xf32>
    %8 = arith.mulf %4, %4 : vector<3x512xf32>
    %c0_3 = arith.constant 0 : index
    %c0_4 = arith.constant 0 : index
    %9 = vector.load %arg6[%c0_3, %c0_4] : memref<10x512xf32, #tpu.memory_space<vmem>>, vector<3x512xf32>
    tpu.vector_store %arg6[%c0_3, %c0_4], %8 {strides = array<i32>} : memref<10x512xf32, #tpu.memory_space<vmem>>, vector<3x512xf32>,
    %10 = arith.mulf %5, %6 : vector<1x512xf32>
    %c3 = arith.constant 3 : index
    %c0_5 = arith.constant 0 : index
    %11 = vector.load %arg6[%c3, %c0_5] : memref<10x512xf32, #tpu.memory_space<vmem>>, vector<1x512xf32>
    tpu.vector_store %arg6[%c3, %c0_5], %10 {strides = array<i32>} : memref<10x512xf32, #tpu.memory_space<vmem>>, vector<1x512xf32>,
    %12 = arith.mulf %5, %7 : vector<1x512xf32>
    %c4 = arith.constant 4 : index
    %c0_6 = arith.constant 0 : index
    %13 = vector.load %arg6[%c4, %c0_6] : memref<10x512xf32, #tpu.memory_space<vmem>>, vector<1x512xf32>
    tpu.vector_store %arg6[%c4, %c0_6], %12 {strides = array<i32>} : memref<10x512xf32, #tpu.memory_space<vmem>>, vector<1x512xf32>,
    %14 = arith.mulf %6, %7 : vector<1x512xf32>
    %c5 = arith.constant 5 : index
    %c0_7 = arith.constant 0 : index
    %15 = vector.load %arg6[%c5, %c0_7] : memref<10x512xf32, #tpu.memory_space<vmem>>, vector<1x512xf32>
    tpu.vector_store %arg6[%c5, %c0_7], %14 {strides = array<i32>} : memref<10x512xf32, #tpu.memory_space<vmem>>, vector<1x512xf32>,
    %c6 = arith.constant 6 : index
    %c0_8 = arith.constant 0 : index
    %16 = vector.load %arg6[%c6, %c0_8] : memref<10x512xf32, #tpu.memory_space<vmem>>, vector<3x512xf32>
    tpu.vector_store %arg6[%c6, %c0_8], %4 {strides = array<i32>} : memref<10x512xf32, #tpu.memory_space<vmem>>, vector<3x512xf32>,
    %cst = arith.constant 1.000000e+00 : f32
    %17 = vector.broadcast %cst : f32 to vector<1x512xf32>
    %c9 = arith.constant 9 : index
    %c0_9 = arith.constant 0 : index
    %18 = vector.load %arg6[%c9, %c0_9] : memref<10x512xf32, #tpu.memory_space<vmem>>, vector<1x512xf32>
    tpu.vector_store %arg6[%c9, %c0_9], %17 {strides = array<i32>} : memref<10x512xf32, #tpu.memory_space<vmem>>, vector<1x512xf32>,
    %c0_10 = arith.constant 0 : index
    %c0_11 = arith.constant 0 : index
    %c0_12 = arith.constant 0 : index
    %19 = vector.load %arg2[%c0_10, %c0_11, %c0_12] : memref<1x128x10xf32, #tpu.memory_space<vmem>>, vector<1x128x10xf32>
    %20 = vector.shape_cast %19 : vector<1x128x10xf32> to vector<128x10xf32>
    %c0_13 = arith.constant 0 : index
    %c0_14 = arith.constant 0 : index
    %21 = vector.load %arg6[%c0_13, %c0_14] : memref<10x512xf32, #tpu.memory_space<vmem>>, vector<10x512xf32>
    %cst_15 = arith.constant dense<0.000000e+00> : vector<128x512xf32>
    %22 = tpu.matmul %20, %21, %cst_15 {dimension_numbers = #tpu.dot_dimension_numbers<[1], [0], [0], [1], [0, 0, 1, 1], [], []>} : vector<128x10xf32>, vector<10x512xf32>, vector<128x512xf32> -> vector<128x512xf32>
    %cst_16 = arith.constant 0.000000e+00 : f32
    %23 = vector.broadcast %cst_16 : f32 to vector<128x512xf32>
    %24 = arith.maximumf %22, %23 : vector<128x512xf32>
    %25 = vector.extract_strided_slice %24 {offsets = [0, 0], sizes = [32, 512], strides = [1, 1]} : vector<128x512xf32> to vector<32x512xf32>
    %cst_17 = arith.constant dense<0x7F800000> : vector<512xf32>
    %26 = vector.multi_reduction <minimumf>, %25, %cst_17 [0] : vector<32x512xf32> to vector<512xf32>
    %c0_18 = arith.constant 0 : index
    %c0_19 = arith.constant 0 : index
    %c0_20 = arith.constant 0 : index
    %27 = vector.load %arg4[%c0_18, %c0_19, %c0_20] : memref<1x4x512xf32, #tpu.memory_space<vmem>>, vector<1x1x512xf32>
    %28 = vector.shape_cast %27 : vector<1x1x512xf32> to vector<512xf32>
    %29 = vector.shape_cast %26 : vector<512xf32> to vector<1x1x512xf32>
    tpu.vector_store %arg4[%c0_18, %c0_19, %c0_20], %29 {strides = array<i32>} : memref<1x4x512xf32, #tpu.memory_space<vmem>>, vector<1x1x512xf32>,
    %c0_21 = arith.constant 0 : index
    %c0_22 = arith.constant 0 : index
    %c0_23 = arith.constant 0 : index
    %30 = vector.load %arg5[%c0_21, %c0_22, %c0_23] : memref<1x4x32xf32, #tpu.memory_space<vmem>>, vector<1x1x32xf32>
    %31 = vector.shape_cast %30 : vector<1x1x32xf32> to vector<32xf32>
    %cst_24 = arith.constant dense<0x7F800000> : vector<32xf32>
    %32 = vector.multi_reduction <minimumf>, %25, %cst_24 [1] : vector<32x512xf32> to vector<32xf32>
    %33 = arith.minimumf %31, %32 : vector<32xf32>
    %c0_25 = arith.constant 0 : index
    %c0_26 = arith.constant 0 : index
    %c0_27 = arith.constant 0 : index
    %34 = vector.load %arg5[%c0_25, %c0_26, %c0_27] : memref<1x4x32xf32, #tpu.memory_space<vmem>>, vector<1x1x32xf32>
    %35 = vector.shape_cast %34 : vector<1x1x32xf32> to vector<32xf32>
    %36 = vector.shape_cast %33 : vector<32xf32> to vector<1x1x32xf32>
    tpu.vector_store %arg5[%c0_25, %c0_26, %c0_27], %36 {strides = array<i32>} : memref<1x4x32xf32, #tpu.memory_space<vmem>>, vector<1x1x32xf32>,
    %37 = vector.extract_strided_slice %24 {offsets = [32, 0], sizes = [32, 512], strides = [1, 1]} : vector<128x512xf32> to vector<32x512xf32>
    %cst_28 = arith.constant dense<0x7F800000> : vector<512xf32>
    %38 = vector.multi_reduction <minimumf>, %37, %cst_28 [0] : vector<32x512xf32> to vector<512xf32>
    %c0_29 = arith.constant 0 : index
    %c1 = arith.constant 1 : index
    %c0_30 = arith.constant 0 : index
    %39 = vector.load %arg4[%c0_29, %c1, %c0_30] : memref<1x4x512xf32, #tpu.memory_space<vmem>>, vector<1x1x512xf32>
    %40 = vector.shape_cast %39 : vector<1x1x512xf32> to vector<512xf32>
    %41 = vector.shape_cast %38 : vector<512xf32> to vector<1x1x512xf32>
    tpu.vector_store %arg4[%c0_29, %c1, %c0_30], %41 {strides = array<i32>} : memref<1x4x512xf32, #tpu.memory_space<vmem>>, vector<1x1x512xf32>,
    %c0_31 = arith.constant 0 : index
    %c1_32 = arith.constant 1 : index
    %c0_33 = arith.constant 0 : index
    %42 = vector.load %arg5[%c0_31, %c1_32, %c0_33] : memref<1x4x32xf32, #tpu.memory_space<vmem>>, vector<1x1x32xf32>
    %43 = vector.shape_cast %42 : vector<1x1x32xf32> to vector<32xf32>
    %cst_34 = arith.constant dense<0x7F800000> : vector<32xf32>
    %44 = vector.multi_reduction <minimumf>, %37, %cst_34 [1] : vector<32x512xf32> to vector<32xf32>
    %45 = arith.minimumf %43, %44 : vector<32xf32>
    %c0_35 = arith.constant 0 : index
    %c1_36 = arith.constant 1 : index
    %c0_37 = arith.constant 0 : index
    %46 = vector.load %arg5[%c0_35, %c1_36, %c0_37] : memref<1x4x32xf32, #tpu.memory_space<vmem>>, vector<1x1x32xf32>
    %47 = vector.shape_cast %46 : vector<1x1x32xf32> to vector<32xf32>
    %48 = vector.shape_cast %45 : vector<32xf32> to vector<1x1x32xf32>
    tpu.vector_store %arg5[%c0_35, %c1_36, %c0_37], %48 {strides = array<i32>} : memref<1x4x32xf32, #tpu.memory_space<vmem>>, vector<1x1x32xf32>,
    %49 = vector.extract_strided_slice %24 {offsets = [64, 0], sizes = [32, 512], strides = [1, 1]} : vector<128x512xf32> to vector<32x512xf32>
    %cst_38 = arith.constant dense<0x7F800000> : vector<512xf32>
    %50 = vector.multi_reduction <minimumf>, %49, %cst_38 [0] : vector<32x512xf32> to vector<512xf32>
    %c0_39 = arith.constant 0 : index
    %c2 = arith.constant 2 : index
    %c0_40 = arith.constant 0 : index
    %51 = vector.load %arg4[%c0_39, %c2, %c0_40] : memref<1x4x512xf32, #tpu.memory_space<vmem>>, vector<1x1x512xf32>
    %52 = vector.shape_cast %51 : vector<1x1x512xf32> to vector<512xf32>
    %53 = vector.shape_cast %50 : vector<512xf32> to vector<1x1x512xf32>
    tpu.vector_store %arg4[%c0_39, %c2, %c0_40], %53 {strides = array<i32>} : memref<1x4x512xf32, #tpu.memory_space<vmem>>, vector<1x1x512xf32>,
    %c0_41 = arith.constant 0 : index
    %c2_42 = arith.constant 2 : index
    %c0_43 = arith.constant 0 : index
    %54 = vector.load %arg5[%c0_41, %c2_42, %c0_43] : memref<1x4x32xf32, #tpu.memory_space<vmem>>, vector<1x1x32xf32>
    %55 = vector.shape_cast %54 : vector<1x1x32xf32> to vector<32xf32>
    %cst_44 = arith.constant dense<0x7F800000> : vector<32xf32>
    %56 = vector.multi_reduction <minimumf>, %49, %cst_44 [1] : vector<32x512xf32> to vector<32xf32>
    %57 = arith.minimumf %55, %56 : vector<32xf32>
    %c0_45 = arith.constant 0 : index
    %c2_46 = arith.constant 2 : index
    %c0_47 = arith.constant 0 : index
    %58 = vector.load %arg5[%c0_45, %c2_46, %c0_47] : memref<1x4x32xf32, #tpu.memory_space<vmem>>, vector<1x1x32xf32>
    %59 = vector.shape_cast %58 : vector<1x1x32xf32> to vector<32xf32>
    %60 = vector.shape_cast %57 : vector<32xf32> to vector<1x1x32xf32>
    tpu.vector_store %arg5[%c0_45, %c2_46, %c0_47], %60 {strides = array<i32>} : memref<1x4x32xf32, #tpu.memory_space<vmem>>, vector<1x1x32xf32>,
    %61 = vector.extract_strided_slice %24 {offsets = [96, 0], sizes = [32, 512], strides = [1, 1]} : vector<128x512xf32> to vector<32x512xf32>
    %cst_48 = arith.constant dense<0x7F800000> : vector<512xf32>
    %62 = vector.multi_reduction <minimumf>, %61, %cst_48 [0] : vector<32x512xf32> to vector<512xf32>
    %c0_49 = arith.constant 0 : index
    %c3_50 = arith.constant 3 : index
    %c0_51 = arith.constant 0 : index
    %63 = vector.load %arg4[%c0_49, %c3_50, %c0_51] : memref<1x4x512xf32, #tpu.memory_space<vmem>>, vector<1x1x512xf32>
    %64 = vector.shape_cast %63 : vector<1x1x512xf32> to vector<512xf32>
    %65 = vector.shape_cast %62 : vector<512xf32> to vector<1x1x512xf32>
    tpu.vector_store %arg4[%c0_49, %c3_50, %c0_51], %65 {strides = array<i32>} : memref<1x4x512xf32, #tpu.memory_space<vmem>>, vector<1x1x512xf32>,
    %c0_52 = arith.constant 0 : index
    %c3_53 = arith.constant 3 : index
    %c0_54 = arith.constant 0 : index
    %66 = vector.load %arg5[%c0_52, %c3_53, %c0_54] : memref<1x4x32xf32, #tpu.memory_space<vmem>>, vector<1x1x32xf32>
    %67 = vector.shape_cast %66 : vector<1x1x32xf32> to vector<32xf32>
    %cst_55 = arith.constant dense<0x7F800000> : vector<32xf32>
    %68 = vector.multi_reduction <minimumf>, %61, %cst_55 [1] : vector<32x512xf32> to vector<32xf32>
    %69 = arith.minimumf %67, %68 : vector<32xf32>
    %c0_56 = arith.constant 0 : index
    %c3_57 = arith.constant 3 : index
    %c0_58 = arith.constant 0 : index
    %70 = vector.load %arg5[%c0_56, %c3_57, %c0_58] : memref<1x4x32xf32, #tpu.memory_space<vmem>>, vector<1x1x32xf32>
    %71 = vector.shape_cast %70 : vector<1x1x32xf32> to vector<32xf32>
    %72 = vector.shape_cast %69 : vector<32xf32> to vector<1x1x32xf32>
    tpu.vector_store %arg5[%c0_56, %c3_57, %c0_58], %72 {strides = array<i32>} : memref<1x4x32xf32, #tpu.memory_space<vmem>>, vector<1x1x32xf32>,
    return
  }
  func.func @transform_0(%arg0: i32, %arg1: i32) -> (i32, i32, i32) {
    %c0_i32 = arith.constant 0 : i32
    %c0_i32_0 = arith.constant 0 : i32
    %c0_i32_1 = arith.constant 0 : i32
    return %arg0, %c0_i32, %c0_i32_0 : i32, i32, i32
  }
  func.func @transform_1(%arg0: i32, %arg1: i32) -> (i32, i32, i32) {
    %c0_i32 = arith.constant 0 : i32
    %c0_i32_0 = arith.constant 0 : i32
    return %arg0, %c0_i32, %arg1 : i32, i32, i32
  }
  func.func @transform_2(%arg0: i32, %arg1: i32) -> (i32, i32, i32) {
    %c0_i32 = arith.constant 0 : i32
    %c0_i32_0 = arith.constant 0 : i32
    return %arg0, %c0_i32, %arg1 : i32, i32, i32
  }
  func.func @transform_3(%arg0: i32, %arg1: i32) -> (i32, i32, i32) {
    %c0_i32 = arith.constant 0 : i32
    %c0_i32_0 = arith.constant 0 : i32
    %c0_i32_1 = arith.constant 0 : i32
    return %arg0, %c0_i32, %c0_i32_0 : i32, i32, i32
  }
}

</mosaic_0001>

<llo_original>
// kernel: tpu_custom_call.1
$region0: #{tpu_custom_call.1}
  #allocation0 [shape = 'u32[]', space=smem, size = 0x4, offset = 0x4, fixed_abs, tag = 'smem constant byte address 0x4 - core index']
  #allocation1 [shape = 'u32[72,128]{1,0:T(1,128)}', space=vmem, size = 0x9000, scoped, tag = 'internal scratch']
  #allocation2 [shape = 'f32[10,512]{1,0:T(8,128)}', space=vmem, size = 0x8000, scoped, tag = 'scratch operand']
  %s0 = inlined_call_operand.vmem [shape: f32[2,128,10], index: 0, kind: input, shape index: {}]
  %s1 = inlined_call_operand.vmem [shape: f32[2,3,1024], index: 1, kind: input, shape index: {}]
  %s2 = inlined_call_operand.hbm [shape: f32[2,4,1024], index: 2, kind: output, shape index: {0}]
  %s3 = inlined_call_operand.hbm [shape: f32[2,4,32], index: 3, kind: output, shape index: {1}]
  %4 = xla_tuple %s2, %s3
  %s5 = sld [smem:[#allocation0]]
  $region53: #{tpu_custom_call.1} parent=0
    _
  %s7 = ssub.s32 1, %s5
  %s8 = scalar_select 0, %s7, %s5
  $region1: #{tpu_custom_call.1} parent=0
    #allocation3 [shape = 'u8[16384]{0}', space=vmem, size = 0x4000, scoped, tag = 'output window, operand 0']
    #allocation4 [shape = 's32[2]{0}', space=sflag, size = 0x8, scoped, tag = 'scoped memory for tpu_custom_call.1']
    #allocation5 [shape = 'u8[4096]{0}', space=vmem, size = 0x1000, scoped, tag = 'output window, operand 1']
    #allocation6 [shape = 's32[2]{0}', space=sflag, size = 0x8, scoped, tag = 'scoped memory for tpu_custom_call.1']
    %9 = vsyncpa [#allocation4], 0
    %s10 = scalar_lea.sflag [#allocation4], 1
    %11 = vsyncpa %s10, 0
    %12 = vsyncpa [#allocation6], 0
    %s13 = scalar_lea.sflag [#allocation6], 1
    %14 = vsyncpa %s13, 0
    loop: start=0, step=1, limit=6
    $region2: #{tpu_custom_call.1} parent=1 // loop_pre_header
      _
    $region3: #{tpu_custom_call.1} parent=1 // loop_header
      %s16 = sphi 0, %s20
      %p17 = scmp.ge.s32.totalorder %s16, 6
      %s23 = sphi 0, %s35
      %s24 = sphi 0, %s31
      %s25 = sphi 0, %s23
      %s26 = sphi 0, %s24
      %s27 = sphi 0, %s25
      %s28 = sphi 0, %s26
      %s38 = sphi 0, %s40
      %s41 = sphi 0, %s38
      %s42 = sphi 0, %s41
      %s58 = sphi 0, %s42
      %s66 = sphi 0, %s68
      %s69 = sphi 0, %s66
      %s70 = sphi 0, %s69
      %s86 = sphi 0, %s70
      %s94 = sphi 0, %s96
      %s97 = sphi 0, %s94
      %s98 = sphi 0, %s97
      %s114 = sphi 0, %s98
      %s120 = sphi 0, %s122
      %s123 = sphi 0, %s120
      %s124 = sphi 0, %s123
      %s140 = sphi 0, %s124
    $region4: #{tpu_custom_call.1} parent=1 // loop_header_branch
      %19 = sbr.rel (%p17) target = $region8
    $region5: #{tpu_custom_call.1} parent=1 // loop_body
      %s21 = ssub.s32 %s16, 1
      %s22 = ssub.s32 %s16, 2
      %s29 = sadd.s32 1, %s24
      %p30 = scmp.ge.s32.totalorder %s29, 2
      %s31 = scalar_select %p30, 0, %s29
      %s32 = sadd.s32 1, %s23
      %s33 = scalar_select %p30, %s32, %s23
      %p34 = scmp.ge.s32.totalorder %s33, 2
      %s35 = scalar_select %p34, 0, %s33
      %s36 = ssub.s32 %s23, %s35
      %p37 = scmp.eq.s32.totalorder %s36, 0
      %s39 = sadd.s32 %s38, 1
      %s40 = scalar_select %p37, %s38, %s39
      %p43 = pneg %p37
      %p44 = scmp.eq.s32.totalorder %s16, 3
      %p45 = por %p43, %p44
      %p46 = scmp.ne.s32.totalorder %s38, %s41
      %p47 = scmp.eq.s32.totalorder %s16, 0
      %p48 = por %p46, %p47
      %p49 = scmp.ne.s32.totalorder %s38, %s41
      %p50 = scmp.eq.s32.totalorder %s21, 3
      %p51 = por %p49, %p50
      %p52 = scmp.ne.s32.totalorder %s41, %s42
      %p53 = scmp.eq.s32.totalorder %s21, 0
      %p54 = por %p52, %p53
      %p55 = scmp.ne.s32.totalorder %s41, %s42
      %p56 = scmp.eq.s32.totalorder %s22, 3
      %p57 = por %p55, %p56
      %p59 = scmp.ne.s32.totalorder %s42, %s58
      %p60 = scmp.eq.s32.totalorder %s22, 0
      %p61 = por %p59, %p60
      %s62 = ssub.s32 %s23, %s35
      %s63 = ssub.s32 %s24, %s31
      %s64 = sor.u32 %s62, %s63
      %p65 = scmp.eq.s32.totalorder %s64, 0
      %s67 = sadd.s32 %s66, 1
      %s68 = scalar_select %p65, %s66, %s67
      %p71 = pneg %p65
      %p72 = scmp.eq.s32.totalorder %s16, 3
      %p73 = por %p71, %p72
      %p74 = scmp.ne.s32.totalorder %s66, %s69
      %p75 = scmp.eq.s32.totalorder %s16, 0
      %p76 = por %p74, %p75
      %p77 = scmp.ne.s32.totalorder %s66, %s69
      %p78 = scmp.eq.s32.totalorder %s21, 3
      %p79 = por %p77, %p78
      %p80 = scmp.ne.s32.totalorder %s69, %s70
      %p81 = scmp.eq.s32.totalorder %s21, 0
      %p82 = por %p80, %p81
      %p83 = scmp.ne.s32.totalorder %s69, %s70
      %p84 = scmp.eq.s32.totalorder %s22, 3
      %p85 = por %p83, %p84
      %p87 = scmp.ne.s32.totalorder %s70, %s86
      %p88 = scmp.eq.s32.totalorder %s22, 0
      %p89 = por %p87, %p88
      %s90 = ssub.s32 %s23, %s35
      %s91 = ssub.s32 %s24, %s31
      %s92 = sor.u32 %s90, %s91
      %p93 = scmp.eq.s32.totalorder %s92, 0
      %s95 = sadd.s32 %s94, 1
      %s96 = scalar_select %p93, %s94, %s95
      %p99 = pneg %p93
      %p100 = scmp.eq.s32.totalorder %s16, 3
      %p101 = por %p99, %p100
      %p102 = scmp.ne.s32.totalorder %s94, %s97
      %p103 = scmp.eq.s32.totalorder %s16, 0
      %p104 = por %p102, %p103
      %p105 = scmp.ne.s32.totalorder %s94, %s97
      %p106 = scmp.eq.s32.totalorder %s21, 3
      %p107 = por %p105, %p106
      %p108 = scmp.ne.s32.totalorder %s97, %s98
      %p109 = scmp.eq.s32.totalorder %s21, 0
      %p110 = por %p108, %p109
      %p111 = scmp.ne.s32.totalorder %s97, %s98
      %p112 = scmp.eq.s32.totalorder %s22, 3
      %p113 = por %p111, %p112
      %p115 = scmp.ne.s32.totalorder %s98, %s114
      %p116 = scmp.eq.s32.totalorder %s22, 0
      %p117 = por %p115, %p116
      %s118 = ssub.s32 %s23, %s35
      %p119 = scmp.eq.s32.totalorder %s118, 0
      %s121 = sadd.s32 %s120, 1
      %s122 = scalar_select %p119, %s120, %s121
      %p125 = pneg %p119
      %p126 = scmp.eq.s32.totalorder %s16, 3
      %p127 = por %p125, %p126
      %p128 = scmp.ne.s32.totalorder %s120, %s123
      %p129 = scmp.eq.s32.totalorder %s16, 0
      %p130 = por %p128, %p129
      %p131 = scmp.ne.s32.totalorder %s120, %s123
      %p132 = scmp.eq.s32.totalorder %s21, 3
      %p133 = por %p131, %p132
      %p134 = scmp.ne.s32.totalorder %s123, %s124
      %p135 = scmp.eq.s32.totalorder %s21, 0
      %p136 = por %p134, %p135
      %p137 = scmp.ne.s32.totalorder %s123, %s124
      %p138 = scmp.eq.s32.totalorder %s22, 3
      %p139 = por %p137, %p138
      %p141 = scmp.ne.s32.totalorder %s124, %s140
      %p142 = scmp.eq.s32.totalorder %s22, 0
      %p143 = por %p141, %p142
      %p144 = scmp.le.s32.totalorder 1, %s16
      %p145 = scmp.lt.s32.totalorder %s16, 5
      %p146 = pnand %p144, %p145
      %p147 = pneg %p146
      // Predicated region
      $region9: #{tpu_custom_call.1} parent=5 // pred_check
        _
      $region10: #{tpu_custom_call.1} parent=5 // pred_check_branch
        %149 = sbr.rel (%p146) target = $region12
      $region11: #{tpu_custom_call.1} parent=5 // pred_region
        %s150 = ssub.s32 %s16, 1
      $region12: #{tpu_custom_call.1} parent=5 // pred_fallthru
        _
      %p151 = scmp.lt.s32.totalorder %s16, 4
      // Predicated region
      $region13: #{tpu_custom_call.1} parent=5 // pred_check
        %p152 = pneg %p151
      $region14: #{tpu_custom_call.1} parent=5 // pred_check_branch
        %154 = sbr.rel (%p152) target = $region16
      $region15: #{tpu_custom_call.1} parent=5 // pred_region
        // Predicated region
        $region17: #{tpu_custom_call.1} parent=15 // pred_check
          %p155 = pneg %p48
        $region18: #{tpu_custom_call.1} parent=15 // pred_check_branch
          %157 = sbr.rel (%p155) target = $region20
        $region19: #{tpu_custom_call.1} parent=15 // pred_region
          %p158 = scmp.lt.s32.totalorder %s23, 1
          %s159 = scalar_select %p158, %s23, 1
          %s160 = smul.addr %s159, 16
          %s161 = smul.addr %s160, 8
          %s162 = scalar_lea.vmem %s0, %s161
        $region20: #{tpu_custom_call.1} parent=15 // pred_fallthru
          _
        // Predicated region
        $region21: #{tpu_custom_call.1} parent=15 // pred_check
          %p163 = pneg %p76
        $region22: #{tpu_custom_call.1} parent=15 // pred_check_branch
          %165 = sbr.rel (%p163) target = $region24
        $region23: #{tpu_custom_call.1} parent=15 // pred_region
          %s166 = smul.u32 4, %s24
          %p167 = scmp.lt.s32.totalorder %s23, 1
          %s168 = scalar_select %p167, %s23, 1
          %p169 = scmp.lt.s32.totalorder %s166, 7
          %s170 = scalar_select %p169, %s166, 7
          %s171 = smul.addr %s168, 8
          %s172 = sadd.s32 %s170, %s171
          %s173 = smul.addr %s172, 4
          %s174 = scalar_lea.vmem %s1, %s173
          %s175 = smul.u32 4, %s24
        $region24: #{tpu_custom_call.1} parent=15 // pred_fallthru
          _
      $region16: #{tpu_custom_call.1} parent=5 // pred_fallthru
        _
      %p176 = scmp.le.s32.totalorder 1, %s16
      %p177 = scmp.lt.s32.totalorder %s16, 5
      %p178 = pnand %p176, %p177
      %p179 = pneg %p178
      // Predicated region
      $region25: #{tpu_custom_call.1} parent=5 // pred_check
        _
      $region26: #{tpu_custom_call.1} parent=5 // pred_check_branch
        %181 = sbr.rel (%p178) target = $region28
      $region27: #{tpu_custom_call.1} parent=5 // pred_region
        %s182 = ssub.s32 %s16, 1
        %p183 = scmp.lt.s32.totalorder %s25, 1
        %s184 = scalar_select %p183, %s25, 1
        %s185 = smul.addr %s184, 16
        %s186 = smul.addr %s185, 8
        %s187 = scalar_lea.vmem %s0, %s186
        %p188 = pneg %p54
        %p189 = pneg %p51
        %s190 = smul.u32 4, %s26
        %p191 = scmp.lt.s32.totalorder %s25, 1
        %s192 = scalar_select %p191, %s25, 1
        %p193 = scmp.lt.s32.totalorder %s190, 7
        %s194 = scalar_select %p193, %s190, 7
        %s195 = smul.addr %s192, 8
        %s196 = sadd.s32 %s194, %s195
        %s197 = smul.addr %s196, 4
        %s198 = scalar_lea.vmem %s1, %s197
        %p199 = pneg %p82
        %p200 = pneg %p79
        %p201 = pneg %p110
        %p202 = pneg %p107
        %s203 = sand.u32 %s97, 1
        %s204 = scalar_lea.sflag [#allocation4], %s203
        %s205 = sand.u32 %s97, 1
        %s206 = smul.addr %s205, 16
        %s207 = scalar_lea.vmem [#allocation3], %s206
        %p208 = pneg %p136
        %p209 = pneg %p133
        %s210 = sand.u32 %s123, 1
        %s211 = scalar_lea.sflag [#allocation6], %s210
        %s212 = sand.u32 %s123, 1
        %s213 = smul.addr %s212, 4
        %s214 = scalar_lea.vmem [#allocation5], %s213
        %p215 = scmp.lt.s32.totalorder %s25, 1
        %s216 = scalar_select %p215, %s25, 1
        %s217 = smul.addr %s216, 16
        %s218 = smul.addr %s217, 8
        %s219 = scalar_lea.vmem %s0, %s218
        %s220 = smul.u32 4, %s26
        %p221 = scmp.lt.s32.totalorder %s25, 1
        %s222 = scalar_select %p221, %s25, 1
        %p223 = scmp.lt.s32.totalorder %s220, 7
        %s224 = scalar_select %p223, %s220, 7
        %s225 = smul.addr %s222, 8
        %s226 = sadd.s32 %s224, %s225
        %s227 = smul.addr %s226, 4
        %s228 = scalar_lea.vmem %s1, %s227
        %s229 = smul.u32 4, %s26
        %s230 = smul.u32 4, %s26
        %p231 = scmp.eq.s32.totalorder %s26, 0
        // Predicated region
        $region29: #{tpu_custom_call.1} parent=27 // pred_check
          %p232 = pneg %p231
        $region30: #{tpu_custom_call.1} parent=27 // pred_check_branch
          %234 = sbr.rel (%p232) target = $region32
        $region31: #{tpu_custom_call.1} parent=27 // pred_region
          %vm235 = vcmask 257024
          %236 = vst.msk [vmem:[%s214] sm:$0xf] %vm235, inf
        $region32: #{tpu_custom_call.1} parent=27 // pred_fallthru
          _
        %v237 = vld [vmem:[%s228] sm:$0x77]
        %v238 = vld [vmem:[%s228 + $0x8] sm:$0x77]
        %v239 = vmul.f32 %v237, %v237
        %v240 = vmul.f32 %v238, %v238
        %243 = vst [vmem:[#allocation1] ss:$2 sm:$0xff] %v239
        %s244 = scalar_lea.vmem [#allocation1], 16
        %245 = vst [vmem:[%s244] ss:$2 sm:$0xff] %v240
        %v246 = vld.sshfl [vmem:[#allocation1] sm:$0xff pattern:$0x75316420]
        %v247 = vld.sshfl [vmem:[#allocation1 + $0x8] sm:$0xff pattern:$0x75316420]
        %v248 = vld.sshfl [vmem:[#allocation1 + $0x10] sm:$0xff pattern:$0x75316420]
        %v249 = vld.sshfl [vmem:[#allocation1 + $0x18] sm:$0xff pattern:$0x75316420]
        %254 = vst [vmem:[#allocation2] sm:$0x7] %v246
        %255 = vst [vmem:[#allocation2 + $0x8] sm:$0x7] %v247
        %256 = vst [vmem:[#allocation2 + $0x10] sm:$0x7] %v248
        %257 = vst [vmem:[#allocation2 + $0x18] sm:$0x7] %v249
        %v260 = vrot.slane %v237, 5
        %v261 = vrot.slane %v260, 4
        %v262 = vrot.slane %v238, 5
        %v263 = vrot.slane %v262, 4
        %v266 = vmul.f32 %v237, %v261
        %v267 = vmul.f32 %v238, %v263
        %v270 = vrot.slane %v266, 3
        %v271 = vrot.slane %v267, 6
        %v272 = vrot.slane %v267, 1
        %vm273 = vcmask 1040384
        %v274 = vsel %vm273, %v266, %v270
        %vm275 = vcmask 1042434
        %v276 = vsel %vm275, %v271, %v272
        %vm277 = vcmask 1041408
        %v278 = vsel %vm277, %v274, %v276
        %v280 = vlaneseq
        %vm281 = vcmp.ge.s32.totalorder %v280, 0
        %vm282 = vcmp.lt.s32.totalorder %v280, 512
        %vm283 = vmand %vm281, %vm282
        %s284 = scalar_lea.vmem [#allocation2], 3
        %285 = vst.msk [vmem:[%s284] ss:$8 sm:$0xf] %vm283, %v278
        %286 = vst.msk [vmem:[%s284] ss:$8 sm:$0x0] %vm283, %v278
        %v287 = vrot.slane %v237, 6
        %v288 = vrot.slane %v287, 4
        %v289 = vrot.slane %v238, 6
        %v290 = vrot.slane %v289, 4
        %v293 = vmul.f32 %v237, %v288
        %v294 = vmul.f32 %v238, %v290
        %v297 = vrot.slane %v293, 3
        %v298 = vrot.slane %v294, 6
        %v299 = vrot.slane %v294, 1
        %v300 = vsel %vm273, %v293, %v297
        %v301 = vsel %vm275, %v298, %v299
        %v302 = vsel %vm277, %v300, %v301
        %s304 = scalar_lea.vmem [#allocation2], 4
        %305 = vst.msk [vmem:[%s304] ss:$8 sm:$0xf] %vm283, %v302
        %306 = vst.msk [vmem:[%s304] ss:$8 sm:$0x0] %vm283, %v302
        %307 = vst [vmem:[#allocation1] sm:$0xff] %v266
        %308 = vst [vmem:[#allocation1 + $0x8] sm:$0xff] %v267
        %s309 = scalar_lea.vmem [#allocation1], 1
        %v310 = vld [vmem:[%s309] ss:$4 sm:$0xff]
        %s312 = scalar_lea.vmem [#allocation2], 5
        %313 = vst.msk [vmem:[%s312] ss:$8 sm:$0xf] %vm283, %v310
        %314 = vst.msk [vmem:[%s312] ss:$8 sm:$0x0] %vm283, %v310
        %315 = vst [vmem:[#allocation1] ss:$2 sm:$0xff] %v237
        %s316 = scalar_lea.vmem [#allocation1], 16
        %317 = vst [vmem:[%s316] ss:$2 sm:$0xff] %v238
        %v318 = vld.sshfl [vmem:[#allocation1] sm:$0xff pattern:$0x75316420]
        %v319 = vld.sshfl [vmem:[#allocation1 + $0x8] sm:$0xff pattern:$0x75316420]
        %v320 = vld.sshfl [vmem:[#allocation1 + $0x10] sm:$0xff pattern:$0x75316420]
        %v321 = vld.sshfl [vmem:[#allocation1 + $0x18] sm:$0xff pattern:$0x75316420]
        %v322 = vrot.slane %v318, 2
        %v323 = vrot.slane %v319, 2
        %v324 = vrot.slane %v320, 2
        %v325 = vrot.slane %v321, 2
        %330 = vst [vmem:[#allocation2] sm:$0xc0] %v322
        %331 = vst [vmem:[#allocation2 + $0x8] sm:$0xc0] %v323
        %332 = vst [vmem:[#allocation2 + $0x10] sm:$0xc0] %v324
        %333 = vst [vmem:[#allocation2 + $0x18] sm:$0xc0] %v325
        %334 = vst [vmem:[#allocation2 + $0x20] sm:$0x1] %v322
        %335 = vst [vmem:[#allocation2 + $0x28] sm:$0x1] %v323
        %336 = vst [vmem:[#allocation2 + $0x30] sm:$0x1] %v324
        %337 = vst [vmem:[#allocation2 + $0x38] sm:$0x1] %v325
        %s338 = scalar_lea.vmem [#allocation2], 33
        %339 = vst.msk [vmem:[%s338] ss:$8 sm:$0xf] %vm283, 1.0
        %340 = vst.msk [vmem:[%s338] ss:$8 sm:$0x0] %vm283, 1.0
        %v341 = vld [vmem:[%s219] sm:$0xff]
        %v342 = vld [vmem:[%s219 + $0x8] sm:$0xff]
        %v343 = vld [vmem:[%s219 + $0x10] sm:$0xff]
        %v344 = vld [vmem:[%s219 + $0x18] sm:$0xff]
        %v345 = vld [vmem:[%s219 + $0x20] sm:$0xff]
        %v346 = vld [vmem:[%s219 + $0x28] sm:$0xff]
        %v347 = vld [vmem:[%s219 + $0x30] sm:$0xff]
        %v348 = vld [vmem:[%s219 + $0x38] sm:$0xff]
        %v349 = vld [vmem:[%s219 + $0x40] sm:$0xff]
        %v350 = vld [vmem:[%s219 + $0x48] sm:$0xff]
        %v351 = vld [vmem:[%s219 + $0x50] sm:$0xff]
        %v352 = vld [vmem:[%s219 + $0x58] sm:$0xff]
        %v353 = vld [vmem:[%s219 + $0x60] sm:$0xff]
        %v354 = vld [vmem:[%s219 + $0x68] sm:$0xff]
        %v355 = vld [vmem:[%s219 + $0x70] sm:$0xff]
        %v356 = vld [vmem:[%s219 + $0x78] sm:$0xff]
        %v357 = vld [vmem:[#allocation2] sm:$0xff]
        %v358 = vld [vmem:[#allocation2 + $0x8] sm:$0xff]
        %v359 = vld [vmem:[#allocation2 + $0x10] sm:$0xff]
        %v360 = vld [vmem:[#allocation2 + $0x18] sm:$0xff]
        %v361 = vld [vmem:[#allocation2 + $0x20] sm:$0x3]
        %v362 = vld [vmem:[#allocation2 + $0x28] sm:$0x3]
        %v363 = vld [vmem:[#allocation2 + $0x30] sm:$0x3]
        %v364 = vld [vmem:[#allocation2 + $0x38] sm:$0x3]
        %vm365 = vcmask 80896
        %v367 = vsel %vm365, %v341, 0
        %v370 = vsel %vm365, %v342, 0
        %v373 = vsel %vm365, %v343, 0
        %v376 = vsel %vm365, %v344, 0
        %v379 = vsel %vm365, %v345, 0
        %v382 = vsel %vm365, %v346, 0
        %v385 = vsel %vm365, %v347, 0
        %v388 = vsel %vm365, %v348, 0
        %v391 = vsel %vm365, %v349, 0
        %v394 = vsel %vm365, %v350, 0
        %v397 = vsel %vm365, %v351, 0
        %v400 = vsel %vm365, %v352, 0
        %v403 = vsel %vm365, %v353, 0
        %v406 = vsel %vm365, %v354, 0
        %v409 = vsel %vm365, %v355, 0
        %v412 = vsel %vm365, %v356, 0
        %v415 = vsel %vm277, %v361, 0
        %v418 = vsel %vm277, %v362, 0
        %v421 = vsel %vm277, %v363, 0
        %v424 = vsel %vm277, %v364, 0
        %426 = vmatpush.msra.mxu0 0.0
        %427 = vmatpush.msra.mxu0 0.0
        %428 = vmatpush.msra.mxu0 0.0
        %429 = vmatpush.msra.mxu0 0.0
        %430 = vmatpush.msra.mxu0 0.0
        %431 = vmatpush.msra.mxu0 0.0
        %432 = vmatpush.msra.mxu0 0.0
        %433 = vmatpush.msra.mxu0 0.0
        %434 = vmatpush.msra.mxu0 0.0
        %435 = vmatpush.msra.mxu0 0.0
        %436 = vmatpush.msra.mxu0 0.0
        %437 = vmatpush.msra.mxu0 0.0
        %438 = vmatpush.msra.mxu0 0.0
        %439 = vmatpush.msra.mxu0 0.0
        %440 = vmatpush.msra.mxu0 %v415
        %441 = vmatpush.msra.mxu0 %v357
        %442 = vmatmul.f32.gmra.mxu0 %v367
        %v443 = vpop.f32.mrf.mxu0
        %v444 = vadd.f32 0.0, %v443
        %445 = vmatmul.f32.gmra.mxu0 %v370
        %v446 = vpop.f32.mrf.mxu0
        %v447 = vadd.f32 0.0, %v446
        %448 = vmatmul.f32.gmra.mxu0 %v373
        %v449 = vpop.f32.mrf.mxu0
        %v450 = vadd.f32 0.0, %v449
        %451 = vmatmul.f32.gmra.mxu0 %v376
        %v452 = vpop.f32.mrf.mxu0
        %v453 = vadd.f32 0.0, %v452
        %454 = vmatmul.f32.gmra.mxu0 %v379
        %v455 = vpop.f32.mrf.mxu0
        %v456 = vadd.f32 0.0, %v455
        %457 = vmatmul.f32.gmra.mxu0 %v382
        %v458 = vpop.f32.mrf.mxu0
        %v459 = vadd.f32 0.0, %v458
        %460 = vmatmul.f32.gmra.mxu0 %v385
        %v461 = vpop.f32.mrf.mxu0
        %v462 = vadd.f32 0.0, %v461
        %463 = vmatmul.f32.gmra.mxu0 %v388
        %v464 = vpop.f32.mrf.mxu0
        %v465 = vadd.f32 0.0, %v464
        %466 = vmatmul.f32.gmra.mxu0 %v391
        %v467 = vpop.f32.mrf.mxu0
        %v468 = vadd.f32 0.0, %v467
        %469 = vmatmul.f32.gmra.mxu0 %v394
        %v470 = vpop.f32.mrf.mxu0
        %v471 = vadd.f32 0.0, %v470
        %472 = vmatmul.f32.gmra.mxu0 %v397
        %v473 = vpop.f32.mrf.mxu0
        %v474 = vadd.f32 0.0, %v473
        %475 = vmatmul.f32.gmra.mxu0 %v400
        %v476 = vpop.f32.mrf.mxu0
        %v477 = vadd.f32 0.0, %v476
        %478 = vmatmul.f32.gmra.mxu0 %v403
        %v479 = vpop.f32.mrf.mxu0
        %v480 = vadd.f32 0.0, %v479
        %481 = vmatmul.f32.gmra.mxu0 %v406
        %v482 = vpop.f32.mrf.mxu0
        %v483 = vadd.f32 0.0, %v482
        %484 = vmatmul.f32.gmra.mxu0 %v409
        %v485 = vpop.f32.mrf.mxu0
        %v486 = vadd.f32 0.0, %v485
        %487 = vmatmul.f32.gmra.mxu0 %v412
        %v488 = vpop.f32.mrf.mxu0
        %v489 = vadd.f32 0.0, %v488
        %490 = vdwg.mxu0
        %491 = vmatpush.msra.mxu0 0.0
        %492 = vmatpush.msra.mxu0 0.0
        %493 = vmatpush.msra.mxu0 0.0
        %494 = vmatpush.msra.mxu0 0.0
        %495 = vmatpush.msra.mxu0 0.0
        %496 = vmatpush.msra.mxu0 0.0
        %497 = vmatpush.msra.mxu0 0.0
        %498 = vmatpush.msra.mxu0 0.0
        %499 = vmatpush.msra.mxu0 0.0
        %500 = vmatpush.msra.mxu0 0.0
        %501 = vmatpush.msra.mxu0 0.0
        %502 = vmatpush.msra.mxu0 0.0
        %503 = vmatpush.msra.mxu0 0.0
        %504 = vmatpush.msra.mxu0 0.0
        %505 = vmatpush.msra.mxu0 %v418
        %506 = vmatpush.msra.mxu0 %v358
        %507 = vmatmul.f32.gmra.mxu0 %v367
        %v508 = vpop.f32.mrf.mxu0
        %v509 = vadd.f32 0.0, %v508
        %510 = vmatmul.f32.gmra.mxu0 %v370
        %v511 = vpop.f32.mrf.mxu0
        %v512 = vadd.f32 0.0, %v511
        %513 = vmatmul.f32.gmra.mxu0 %v373
        %v514 = vpop.f32.mrf.mxu0
        %v515 = vadd.f32 0.0, %v514
        %516 = vmatmul.f32.gmra.mxu0 %v376
        %v517 = vpop.f32.mrf.mxu0
        %v518 = vadd.f32 0.0, %v517
        %519 = vmatmul.f32.gmra.mxu0 %v379
        %v520 = vpop.f32.mrf.mxu0
        %v521 = vadd.f32 0.0, %v520
        %522 = vmatmul.f32.gmra.mxu0 %v382
        %v523 = vpop.f32.mrf.mxu0
        %v524 = vadd.f32 0.0, %v523
        %525 = vmatmul.f32.gmra.mxu0 %v385
        %v526 = vpop.f32.mrf.mxu0
        %v527 = vadd.f32 0.0, %v526
        %528 = vmatmul.f32.gmra.mxu0 %v388
        %v529 = vpop.f32.mrf.mxu0
        %v530 = vadd.f32 0.0, %v529
        %531 = vmatmul.f32.gmra.mxu0 %v391
        %v532 = vpop.f32.mrf.mxu0
        %v533 = vadd.f32 0.0, %v532
        %534 = vmatmul.f32.gmra.mxu0 %v394
        %v535 = vpop.f32.mrf.mxu0
        %v536 = vadd.f32 0.0, %v535
        %537 = vmatmul.f32.gmra.mxu0 %v397
        %v538 = vpop.f32.mrf.mxu0
        %v539 = vadd.f32 0.0, %v538
        %540 = vmatmul.f32.gmra.mxu0 %v400
        %v541 = vpop.f32.mrf.mxu0
        %v542 = vadd.f32 0.0, %v541
        %543 = vmatmul.f32.gmra.mxu0 %v403
        %v544 = vpop.f32.mrf.mxu0
        %v545 = vadd.f32 0.0, %v544
        %546 = vmatmul.f32.gmra.mxu0 %v406
        %v547 = vpop.f32.mrf.mxu0
        %v548 = vadd.f32 0.0, %v547
        %549 = vmatmul.f32.gmra.mxu0 %v409
        %v550 = vpop.f32.mrf.mxu0
        %v551 = vadd.f32 0.0, %v550
        %552 = vmatmul.f32.gmra.mxu0 %v412
        %v553 = vpop.f32.mrf.mxu0
        %v554 = vadd.f32 0.0, %v553
        %555 = vdwg.mxu0
        %556 = vmatpush.msra.mxu0 0.0
        %557 = vmatpush.msra.mxu0 0.0
        %558 = vmatpush.msra.mxu0 0.0
        %559 = vmatpush.msra.mxu0 0.0
        %560 = vmatpush.msra.mxu0 0.0
        %561 = vmatpush.msra.mxu0 0.0
        %562 = vmatpush.msra.mxu0 0.0
        %563 = vmatpush.msra.mxu0 0.0
        %564 = vmatpush.msra.mxu0 0.0
        %565 = vmatpush.msra.mxu0 0.0
        %566 = vmatpush.msra.mxu0 0.0
        %567 = vmatpush.msra.mxu0 0.0
        %568 = vmatpush.msra.mxu0 0.0
        %569 = vmatpush.msra.mxu0 0.0
        %570 = vmatpush.msra.mxu0 %v421
        %571 = vmatpush.msra.mxu0 %v359
        %572 = vmatmul.f32.gmra.mxu0 %v367
        %v573 = vpop.f32.mrf.mxu0
        %v574 = vadd.f32 0.0, %v573
        %575 = vmatmul.f32.gmra.mxu0 %v370
        %v576 = vpop.f32.mrf.mxu0
        %v577 = vadd.f32 0.0, %v576
        %578 = vmatmul.f32.gmra.mxu0 %v373
        %v579 = vpop.f32.mrf.mxu0
        %v580 = vadd.f32 0.0, %v579
        %581 = vmatmul.f32.gmra.mxu0 %v376
        %v582 = vpop.f32.mrf.mxu0
        %v583 = vadd.f32 0.0, %v582
        %584 = vmatmul.f32.gmra.mxu0 %v379
        %v585 = vpop.f32.mrf.mxu0
        %v586 = vadd.f32 0.0, %v585
        %587 = vmatmul.f32.gmra.mxu0 %v382
        %v588 = vpop.f32.mrf.mxu0
        %v589 = vadd.f32 0.0, %v588
        %590 = vmatmul.f32.gmra.mxu0 %v385
        %v591 = vpop.f32.mrf.mxu0
        %v592 = vadd.f32 0.0, %v591
        %593 = vmatmul.f32.gmra.mxu0 %v388
        %v594 = vpop.f32.mrf.mxu0
        %v595 = vadd.f32 0.0, %v594
        %596 = vmatmul.f32.gmra.mxu0 %v391
        %v597 = vpop.f32.mrf.mxu0
        %v598 = vadd.f32 0.0, %v597
        %599 = vmatmul.f32.gmra.mxu0 %v394
        %v600 = vpop.f32.mrf.mxu0
        %v601 = vadd.f32 0.0, %v600
        %602 = vmatmul.f32.gmra.mxu0 %v397
        %v603 = vpop.f32.mrf.mxu0
        %v604 = vadd.f32 0.0, %v603
        %605 = vmatmul.f32.gmra.mxu0 %v400
        %v606 = vpop.f32.mrf.mxu0
        %v607 = vadd.f32 0.0, %v606
        %608 = vmatmul.f32.gmra.mxu0 %v403
        %v609 = vpop.f32.mrf.mxu0
        %v610 = vadd.f32 0.0, %v609
        %611 = vmatmul.f32.gmra.mxu0 %v406
        %v612 = vpop.f32.mrf.mxu0
        %v613 = vadd.f32 0.0, %v612
        %614 = vmatmul.f32.gmra.mxu0 %v409
        %v615 = vpop.f32.mrf.mxu0
        %v616 = vadd.f32 0.0, %v615
        %617 = vmatmul.f32.gmra.mxu0 %v412
        %v618 = vpop.f32.mrf.mxu0
        %v619 = vadd.f32 0.0, %v618
        %620 = vdwg.mxu0
        %621 = vmatpush.msra.mxu0 0.0
        %622 = vmatpush.msra.mxu0 0.0
        %623 = vmatpush.msra.mxu0 0.0
        %624 = vmatpush.msra.mxu0 0.0
        %625 = vmatpush.msra.mxu0 0.0
        %626 = vmatpush.msra.mxu0 0.0
        %627 = vmatpush.msra.mxu0 0.0
        %628 = vmatpush.msra.mxu0 0.0
        %629 = vmatpush.msra.mxu0 0.0
        %630 = vmatpush.msra.mxu0 0.0
        %631 = vmatpush.msra.mxu0 0.0
        %632 = vmatpush.msra.mxu0 0.0
        %633 = vmatpush.msra.mxu0 0.0
        %634 = vmatpush.msra.mxu0 0.0
        %635 = vmatpush.msra.mxu0 %v424
        %636 = vmatpush.msra.mxu0 %v360
        %637 = vmatmul.f32.gmra.mxu0 %v367
        %v638 = vpop.f32.mrf.mxu0
        %v639 = vadd.f32 0.0, %v638
        %640 = vmatmul.f32.gmra.mxu0 %v370
        %v641 = vpop.f32.mrf.mxu0
        %v642 = vadd.f32 0.0, %v641
        %643 = vmatmul.f32.gmra.mxu0 %v373
        %v644 = vpop.f32.mrf.mxu0
        %v645 = vadd.f32 0.0, %v644
        %646 = vmatmul.f32.gmra.mxu0 %v376
        %v647 = vpop.f32.mrf.mxu0
        %v648 = vadd.f32 0.0, %v647
        %649 = vmatmul.f32.gmra.mxu0 %v379
        %v650 = vpop.f32.mrf.mxu0
        %v651 = vadd.f32 0.0, %v650
        %652 = vmatmul.f32.gmra.mxu0 %v382
        %v653 = vpop.f32.mrf.mxu0
        %v654 = vadd.f32 0.0, %v653
        %655 = vmatmul.f32.gmra.mxu0 %v385
        %v656 = vpop.f32.mrf.mxu0
        %v657 = vadd.f32 0.0, %v656
        %658 = vmatmul.f32.gmra.mxu0 %v388
        %v659 = vpop.f32.mrf.mxu0
        %v660 = vadd.f32 0.0, %v659
        %661 = vmatmul.f32.gmra.mxu0 %v391
        %v662 = vpop.f32.mrf.mxu0
        %v663 = vadd.f32 0.0, %v662
        %664 = vmatmul.f32.gmra.mxu0 %v394
        %v665 = vpop.f32.mrf.mxu0
        %v666 = vadd.f32 0.0, %v665
        %667 = vmatmul.f32.gmra.mxu0 %v397
        %v668 = vpop.f32.mrf.mxu0
        %v669 = vadd.f32 0.0, %v668
        %670 = vmatmul.f32.gmra.mxu0 %v400
        %v671 = vpop.f32.mrf.mxu0
        %v672 = vadd.f32 0.0, %v671
        %673 = vmatmul.f32.gmra.mxu0 %v403
        %v674 = vpop.f32.mrf.mxu0
        %v675 = vadd.f32 0.0, %v674
        %676 = vmatmul.f32.gmra.mxu0 %v406
        %v677 = vpop.f32.mrf.mxu0
        %v678 = vadd.f32 0.0, %v677
        %679 = vmatmul.f32.gmra.mxu0 %v409
        %v680 = vpop.f32.mrf.mxu0
        %v681 = vadd.f32 0.0, %v680
        %682 = vmatmul.f32.gmra.mxu0 %v412
        %v683 = vpop.f32.mrf.mxu0
        %v684 = vadd.f32 0.0, %v683
        %685 = vdwg.mxu0
        %v686 = vmax.f32 %v444, 0.0
        %v687 = vmax.f32 %v509, 0.0
        %v688 = vmax.f32 %v574, 0.0
        %v689 = vmax.f32 %v639, 0.0
        %v690 = vmax.f32 %v447, 0.0
        %v691 = vmax.f32 %v512, 0.0
        %v692 = vmax.f32 %v577, 0.0
        %v693 = vmax.f32 %v642, 0.0
        %v694 = vmax.f32 %v450, 0.0
        %v695 = vmax.f32 %v515, 0.0
        %v696 = vmax.f32 %v580, 0.0
        %v697 = vmax.f32 %v645, 0.0
        %v698 = vmax.f32 %v453, 0.0
        %v699 = vmax.f32 %v518, 0.0
        %v700 = vmax.f32 %v583, 0.0
        %v701 = vmax.f32 %v648, 0.0
        %v702 = vmax.f32 %v456, 0.0
        %v703 = vmax.f32 %v521, 0.0
        %v704 = vmax.f32 %v586, 0.0
        %v705 = vmax.f32 %v651, 0.0
        %v706 = vmax.f32 %v459, 0.0
        %v707 = vmax.f32 %v524, 0.0
        %v708 = vmax.f32 %v589, 0.0
        %v709 = vmax.f32 %v654, 0.0
        %v710 = vmax.f32 %v462, 0.0
        %v711 = vmax.f32 %v527, 0.0
        %v712 = vmax.f32 %v592, 0.0
        %v713 = vmax.f32 %v657, 0.0
        %v714 = vmax.f32 %v465, 0.0
        %v715 = vmax.f32 %v530, 0.0
        %v716 = vmax.f32 %v595, 0.0
        %v717 = vmax.f32 %v660, 0.0
        %v718 = vmax.f32 %v468, 0.0
        %v719 = vmax.f32 %v533, 0.0
        %v720 = vmax.f32 %v598, 0.0
        %v721 = vmax.f32 %v663, 0.0
        %v722 = vmax.f32 %v471, 0.0
        %v723 = vmax.f32 %v536, 0.0
        %v724 = vmax.f32 %v601, 0.0
        %v725 = vmax.f32 %v666, 0.0
        %v726 = vmax.f32 %v474, 0.0
        %v727 = vmax.f32 %v539, 0.0
        %v728 = vmax.f32 %v604, 0.0
        %v729 = vmax.f32 %v669, 0.0
        %v730 = vmax.f32 %v477, 0.0
        %v731 = vmax.f32 %v542, 0.0
        %v732 = vmax.f32 %v607, 0.0
        %v733 = vmax.f32 %v672, 0.0
        %v734 = vmax.f32 %v480, 0.0
        %v735 = vmax.f32 %v545, 0.0
        %v736 = vmax.f32 %v610, 0.0
        %v737 = vmax.f32 %v675, 0.0
        %v738 = vmax.f32 %v483, 0.0
        %v739 = vmax.f32 %v548, 0.0
        %v740 = vmax.f32 %v613, 0.0
        %v741 = vmax.f32 %v678, 0.0
        %v742 = vmax.f32 %v486, 0.0
        %v743 = vmax.f32 %v551, 0.0
        %v744 = vmax.f32 %v616, 0.0
        %v745 = vmax.f32 %v681, 0.0
        %v746 = vmax.f32 %v489, 0.0
        %v747 = vmax.f32 %v554, 0.0
        %v748 = vmax.f32 %v619, 0.0
        %v749 = vmax.f32 %v684, 0.0
        %v750 = vmin.f32 %v686, %v690
        %v751 = vmin.f32 %v750, %v694
        %v752 = vmin.f32 %v751, %v698
        %v753 = vrot.slane %v752, 4
        %v754 = vmin.f32 %v752, %v753
        %v755 = vrot.slane %v754, 2
        %v756 = vmin.f32 %v754, %v755
        %v757 = vrot.slane %v756, 1
        %v758 = vmin.f32 %v756, %v757
        %v759 = vmin.f32 %v687, %v691
        %v760 = vmin.f32 %v759, %v695
        %v761 = vmin.f32 %v760, %v699
        %v762 = vrot.slane %v761, 4
        %v763 = vmin.f32 %v761, %v762
        %v764 = vrot.slane %v763, 2
        %v765 = vmin.f32 %v763, %v764
        %v766 = vrot.slane %v765, 1
        %v767 = vmin.f32 %v765, %v766
        %v768 = vmin.f32 %v688, %v692
        %v769 = vmin.f32 %v768, %v696
        %v770 = vmin.f32 %v769, %v700
        %v771 = vrot.slane %v770, 4
        %v772 = vmin.f32 %v770, %v771
        %v773 = vrot.slane %v772, 2
        %v774 = vmin.f32 %v772, %v773
        %v775 = vrot.slane %v774, 1
        %v776 = vmin.f32 %v774, %v775
        %v777 = vmin.f32 %v689, %v693
        %v778 = vmin.f32 %v777, %v697
        %v779 = vmin.f32 %v778, %v701
        %v780 = vrot.slane %v779, 4
        %v781 = vmin.f32 %v779, %v780
        %v782 = vrot.slane %v781, 2
        %v783 = vmin.f32 %v781, %v782
        %v784 = vrot.slane %v783, 1
        %v785 = vmin.f32 %v783, %v784
        %v790 = vrot.slane %v767, 7
        %v791 = vrot.slane %v776, 6
        %v792 = vrot.slane %v785, 5
        %v793 = vsel %vm273, %v758, %v790
        %v794 = vsel %vm275, %v791, %v792
        %v795 = vsel %vm277, %v793, %v794
        %797 = vst.msk [vmem:[%s207] ss:$4 sm:$0xf] %vm283, %v795
        %v798 = vld [vmem:[%s214] sm:$0x1]
        %v799 = vmin.f32 %v686, %v687
        %v800 = vmin.f32 %v799, %v688
        %v801 = vmin.f32 %v800, %v689
        %802 = vmin.xlane.f32.xlu0 %v801
        %v803 = vpop.xlane.xlu0 %802
        %v804 = vmin.f32 %v690, %v691
        %v805 = vmin.f32 %v804, %v692
        %v806 = vmin.f32 %v805, %v693
        %807 = vmin.xlane.f32.xlu0 %v806
        %v808 = vpop.xlane.xlu0 %807
        %v809 = vmin.f32 %v694, %v695
        %v810 = vmin.f32 %v809, %v696
        %v811 = vmin.f32 %v810, %v697
        %812 = vmin.xlane.f32.xlu0 %v811
        %v813 = vpop.xlane.xlu0 %812
        %v814 = vmin.f32 %v698, %v699
        %v815 = vmin.f32 %v814, %v700
        %v816 = vmin.f32 %v815, %v701
        %817 = vmin.xlane.f32.xlu0 %v816
        %v818 = vpop.xlane.xlu0 %817
        %v823 = vlaneseq
        %v824 = vand.u32 %v823, 127
        %v825 = vperm.slane %v803, %v824
        %v826 = vadd.s32 %v824, 4294967288
        %v827 = vperm.slane %v808, %v826
        %vm828 = vcmask 130112
        %v829 = vsel %vm828, %v827, %v825
        %v830 = vadd.s32 %v824, 4294967280
        %v831 = vperm.slane %v813, %v830
        %vm832 = vcmask 195712
        %v833 = vsel %vm832, %v831, %v829
        %v834 = vadd.s32 %v824, 4294967272
        %v835 = vperm.slane %v818, %v834
        %vm836 = vcmask 261312
        %v837 = vsel %vm836, %v835, %v833
        %v839 = vmin.f32 %v798, %v837
        %vm840 = vcmask 253952
        %841 = vst.msk [vmem:[%s214] sm:$0x1] %vm840, %v839
        %v842 = vmin.f32 %v702, %v706
        %v843 = vmin.f32 %v842, %v710
        %v844 = vmin.f32 %v843, %v714
        %v845 = vrot.slane %v844, 4
        %v846 = vmin.f32 %v844, %v845
        %v847 = vrot.slane %v846, 2
        %v848 = vmin.f32 %v846, %v847
        %v849 = vrot.slane %v848, 1
        %v850 = vmin.f32 %v848, %v849
        %v851 = vmin.f32 %v703, %v707
        %v852 = vmin.f32 %v851, %v711
        %v853 = vmin.f32 %v852, %v715
        %v854 = vrot.slane %v853, 4
        %v855 = vmin.f32 %v853, %v854
        %v856 = vrot.slane %v855, 2
        %v857 = vmin.f32 %v855, %v856
        %v858 = vrot.slane %v857, 1
        %v859 = vmin.f32 %v857, %v858
        %v860 = vmin.f32 %v704, %v708
        %v861 = vmin.f32 %v860, %v712
        %v862 = vmin.f32 %v861, %v716
        %v863 = vrot.slane %v862, 4
        %v864 = vmin.f32 %v862, %v863
        %v865 = vrot.slane %v864, 2
        %v866 = vmin.f32 %v864, %v865
        %v867 = vrot.slane %v866, 1
        %v868 = vmin.f32 %v866, %v867
        %v869 = vmin.f32 %v705, %v709
        %v870 = vmin.f32 %v869, %v713
        %v871 = vmin.f32 %v870, %v717
        %v872 = vrot.slane %v871, 4
        %v873 = vmin.f32 %v871, %v872
        %v874 = vrot.slane %v873, 2
        %v875 = vmin.f32 %v873, %v874
        %v876 = vrot.slane %v875, 1
        %v877 = vmin.f32 %v875, %v876
        %v882 = vrot.slane %v859, 7
        %v883 = vrot.slane %v868, 6
        %v884 = vrot.slane %v877, 5
        %v885 = vsel %vm273, %v850, %v882
        %v886 = vsel %vm275, %v883, %v884
        %v887 = vsel %vm277, %v885, %v886
        %s889 = scalar_lea.vmem %s207, 1 [#allocation3]
        %890 = vst.msk [vmem:[%s889] ss:$4 sm:$0xf] %vm283, %v887
        %v891 = vld [vmem:[%s214 + $0x1] sm:$0x1]
        %v892 = vmin.f32 %v702, %v703
        %v893 = vmin.f32 %v892, %v704
        %v894 = vmin.f32 %v893, %v705
        %895 = vmin.xlane.f32.xlu0 %v894
        %v896 = vpop.xlane.xlu0 %895
        %v897 = vmin.f32 %v706, %v707
        %v898 = vmin.f32 %v897, %v708
        %v899 = vmin.f32 %v898, %v709
        %900 = vmin.xlane.f32.xlu0 %v899
        %v901 = vpop.xlane.xlu0 %900
        %v902 = vmin.f32 %v710, %v711
        %v903 = vmin.f32 %v902, %v712
        %v904 = vmin.f32 %v903, %v713
        %905 = vmin.xlane.f32.xlu0 %v904
        %v906 = vpop.xlane.xlu0 %905
        %v907 = vmin.f32 %v714, %v715
        %v908 = vmin.f32 %v907, %v716
        %v909 = vmin.f32 %v908, %v717
        %910 = vmin.xlane.f32.xlu0 %v909
        %v911 = vpop.xlane.xlu0 %910
        %v916 = vperm.slane %v896, %v824
        %v917 = vperm.slane %v901, %v826
        %v918 = vsel %vm828, %v917, %v916
        %v919 = vperm.slane %v906, %v830
        %v920 = vsel %vm832, %v919, %v918
        %v921 = vperm.slane %v911, %v834
        %v922 = vsel %vm836, %v921, %v920
        %v924 = vmin.f32 %v891, %v922
        %925 = vst.msk [vmem:[%s214 + $0x1] sm:$0x1] %vm840, %v924
        %v926 = vmin.f32 %v718, %v722
        %v927 = vmin.f32 %v926, %v726
        %v928 = vmin.f32 %v927, %v730
        %v929 = vrot.slane %v928, 4
        %v930 = vmin.f32 %v928, %v929
        %v931 = vrot.slane %v930, 2
        %v932 = vmin.f32 %v930, %v931
        %v933 = vrot.slane %v932, 1
        %v934 = vmin.f32 %v932, %v933
        %v935 = vmin.f32 %v719, %v723
        %v936 = vmin.f32 %v935, %v727
        %v937 = vmin.f32 %v936, %v731
        %v938 = vrot.slane %v937, 4
        %v939 = vmin.f32 %v937, %v938
        %v940 = vrot.slane %v939, 2
        %v941 = vmin.f32 %v939, %v940
        %v942 = vrot.slane %v941, 1
        %v943 = vmin.f32 %v941, %v942
        %v944 = vmin.f32 %v720, %v724
        %v945 = vmin.f32 %v944, %v728
        %v946 = vmin.f32 %v945, %v732
        %v947 = vrot.slane %v946, 4
        %v948 = vmin.f32 %v946, %v947
        %v949 = vrot.slane %v948, 2
        %v950 = vmin.f32 %v948, %v949
        %v951 = vrot.slane %v950, 1
        %v952 = vmin.f32 %v950, %v951
        %v953 = vmin.f32 %v721, %v725
        %v954 = vmin.f32 %v953, %v729
        %v955 = vmin.f32 %v954, %v733
        %v956 = vrot.slane %v955, 4
        %v957 = vmin.f32 %v955, %v956
        %v958 = vrot.slane %v957, 2
        %v959 = vmin.f32 %v957, %v958
        %v960 = vrot.slane %v959, 1
        %v961 = vmin.f32 %v959, %v960
        %v966 = vrot.slane %v943, 7
        %v967 = vrot.slane %v952, 6
        %v968 = vrot.slane %v961, 5
        %v969 = vsel %vm273, %v934, %v966
        %v970 = vsel %vm275, %v967, %v968
        %v971 = vsel %vm277, %v969, %v970
        %s973 = scalar_lea.vmem %s207, 2 [#allocation3]
        %974 = vst.msk [vmem:[%s973] ss:$4 sm:$0xf] %vm283, %v971
        %v975 = vld [vmem:[%s214 + $0x2] sm:$0x1]
        %v976 = vmin.f32 %v718, %v719
        %v977 = vmin.f32 %v976, %v720
        %v978 = vmin.f32 %v977, %v721
        %979 = vmin.xlane.f32.xlu0 %v978
        %v980 = vpop.xlane.xlu0 %979
        %v981 = vmin.f32 %v722, %v723
        %v982 = vmin.f32 %v981, %v724
        %v983 = vmin.f32 %v982, %v725
        %984 = vmin.xlane.f32.xlu0 %v983
        %v985 = vpop.xlane.xlu0 %984
        %v986 = vmin.f32 %v726, %v727
        %v987 = vmin.f32 %v986, %v728
        %v988 = vmin.f32 %v987, %v729
        %989 = vmin.xlane.f32.xlu0 %v988
        %v990 = vpop.xlane.xlu0 %989
        %v991 = vmin.f32 %v730, %v731
        %v992 = vmin.f32 %v991, %v732
        %v993 = vmin.f32 %v992, %v733
        %994 = vmin.xlane.f32.xlu0 %v993
        %v995 = vpop.xlane.xlu0 %994
        %v1000 = vperm.slane %v980, %v824
        %v1001 = vperm.slane %v985, %v826
        %v1002 = vsel %vm828, %v1001, %v1000
        %v1003 = vperm.slane %v990, %v830
        %v1004 = vsel %vm832, %v1003, %v1002
        %v1005 = vperm.slane %v995, %v834
        %v1006 = vsel %vm836, %v1005, %v1004
        %v1008 = vmin.f32 %v975, %v1006
        %1009 = vst.msk [vmem:[%s214 + $0x2] sm:$0x1] %vm840, %v1008
        %v1010 = vmin.f32 %v734, %v738
        %v1011 = vmin.f32 %v1010, %v742
        %v1012 = vmin.f32 %v1011, %v746
        %v1013 = vrot.slane %v1012, 4
        %v1014 = vmin.f32 %v1012, %v1013
        %v1015 = vrot.slane %v1014, 2
        %v1016 = vmin.f32 %v1014, %v1015
        %v1017 = vrot.slane %v1016, 1
        %v1018 = vmin.f32 %v1016, %v1017
        %v1019 = vmin.f32 %v735, %v739
        %v1020 = vmin.f32 %v1019, %v743
        %v1021 = vmin.f32 %v1020, %v747
        %v1022 = vrot.slane %v1021, 4
        %v1023 = vmin.f32 %v1021, %v1022
        %v1024 = vrot.slane %v1023, 2
        %v1025 = vmin.f32 %v1023, %v1024
        %v1026 = vrot.slane %v1025, 1
        %v1027 = vmin.f32 %v1025, %v1026
        %v1028 = vmin.f32 %v736, %v740
        %v1029 = vmin.f32 %v1028, %v744
        %v1030 = vmin.f32 %v1029, %v748
        %v1031 = vrot.slane %v1030, 4
        %v1032 = vmin.f32 %v1030, %v1031
        %v1033 = vrot.slane %v1032, 2
        %v1034 = vmin.f32 %v1032, %v1033
        %v1035 = vrot.slane %v1034, 1
        %v1036 = vmin.f32 %v1034, %v1035
        %v1037 = vmin.f32 %v737, %v741
        %v1038 = vmin.f32 %v1037, %v745
        %v1039 = vmin.f32 %v1038, %v749
        %v1040 = vrot.slane %v1039, 4
        %v1041 = vmin.f32 %v1039, %v1040
        %v1042 = vrot.slane %v1041, 2
        %v1043 = vmin.f32 %v1041, %v1042
        %v1044 = vrot.slane %v1043, 1
        %v1045 = vmin.f32 %v1043, %v1044
        %v1050 = vrot.slane %v1027, 7
        %v1051 = vrot.slane %v1036, 6
        %v1052 = vrot.slane %v1045, 5
        %v1053 = vsel %vm273, %v1018, %v1050
        %v1054 = vsel %vm275, %v1051, %v1052
        %v1055 = vsel %vm277, %v1053, %v1054
        %s1057 = scalar_lea.vmem %s207, 3 [#allocation3]
        %1058 = vst.msk [vmem:[%s1057] ss:$4 sm:$0xf] %vm283, %v1055
        %v1059 = vld [vmem:[%s214 + $0x3] sm:$0x1]
        %v1060 = vmin.f32 %v734, %v735
        %v1061 = vmin.f32 %v1060, %v736
        %v1062 = vmin.f32 %v1061, %v737
        %1063 = vmin.xlane.f32.xlu0 %v1062
        %v1064 = vpop.xlane.xlu0 %1063
        %v1065 = vmin.f32 %v738, %v739
        %v1066 = vmin.f32 %v1065, %v740
        %v1067 = vmin.f32 %v1066, %v741
        %1068 = vmin.xlane.f32.xlu0 %v1067
        %v1069 = vpop.xlane.xlu0 %1068
        %v1070 = vmin.f32 %v742, %v743
        %v1071 = vmin.f32 %v1070, %v744
        %v1072 = vmin.f32 %v1071, %v745
        %1073 = vmin.xlane.f32.xlu0 %v1072
        %v1074 = vpop.xlane.xlu0 %1073
        %v1075 = vmin.f32 %v746, %v747
        %v1076 = vmin.f32 %v1075, %v748
        %v1077 = vmin.f32 %v1076, %v749
        %1078 = vmin.xlane.f32.xlu0 %v1077
        %v1079 = vpop.xlane.xlu0 %1078
        %v1084 = vperm.slane %v1064, %v824
        %v1085 = vperm.slane %v1069, %v826
        %v1086 = vsel %vm828, %v1085, %v1084
        %v1087 = vperm.slane %v1074, %v830
        %v1088 = vsel %vm832, %v1087, %v1086
        %v1089 = vperm.slane %v1079, %v834
        %v1090 = vsel %vm836, %v1089, %v1088
        %v1092 = vmin.f32 %v1059, %v1090
        %1093 = vst.msk [vmem:[%s214 + $0x3] sm:$0x1] %vm840, %v1092
        %s1094 = sand.u32 %s97, 1
        %s1095 = scalar_lea.sflag [#allocation4], %s1094
        %s1096 = sand.u32 %s97, 1
        %s1097 = smul.addr %s1096, 16
        %s1098 = scalar_lea.vmem [#allocation3], %s1097
        %s1099 = sand.u32 %s123, 1
        %s1100 = scalar_lea.sflag [#allocation6], %s1099
        %s1101 = sand.u32 %s123, 1
        %s1102 = smul.addr %s1101, 4
        %s1103 = scalar_lea.vmem [#allocation5], %s1102
        // Predicated region
        $region33: #{tpu_custom_call.1} parent=27 // pred_check
          %p1104 = pneg %p107
        $region34: #{tpu_custom_call.1} parent=27 // pred_check_branch
          %1106 = sbr.rel (%p1104) target = $region36
        $region35: #{tpu_custom_call.1} parent=27 // pred_region
          %s1107 = smul.u32 4, %s26
          %1109 = vsyncadd %s1095, 0
          %s1110 = smul.addr %s25, 8
          %s1111 = sadd.s32 %s1107, %s1110
          %s1112 = smul.addr %s1111, 4
          %s1113 = scalar_lea.hbm %s2, %s1112
          %s1115 = sshll.u32 %s1098, 4
          %s1116 = int_to_ptr.vmem [resolvable:$true] %s1115
          %s1117 = sshll.u32 %s1113, 4
          %s1118 = int_to_ptr.hbm [resolvable:$true] %s1117
          %1120 = dma.vmem_to_hbm [thread:$0]  %s1116, 256, %s1118, %s1095
        $region36: #{tpu_custom_call.1} parent=27 // pred_fallthru
          _
        // Predicated region
        $region37: #{tpu_custom_call.1} parent=27 // pred_check
          %p1121 = pneg %p133
        $region38: #{tpu_custom_call.1} parent=27 // pred_check_branch
          %1123 = sbr.rel (%p1121) target = $region40
        $region39: #{tpu_custom_call.1} parent=27 // pred_region
          %1125 = vsyncadd %s1100, 0
          %s1126 = smul.addr %s25, 4
          %s1127 = scalar_lea.hbm %s3, %s1126
          %s1129 = sshll.u32 %s1103, 4
          %s1130 = int_to_ptr.vmem [resolvable:$true] %s1129
          %s1131 = sshll.u32 %s1127, 4
          %s1132 = int_to_ptr.hbm [resolvable:$true] %s1131
          %1134 = dma.vmem_to_hbm [thread:$0]  %s1130, 64, %s1132, %s1100
        $region40: #{tpu_custom_call.1} parent=27 // pred_fallthru
          _
      $region28: #{tpu_custom_call.1} parent=5 // pred_fallthru
        _
      %p1135 = scmp.le.s32.totalorder 2, %s16
      // Predicated region
      $region41: #{tpu_custom_call.1} parent=5 // pred_check
        %p1136 = pneg %p1135
      $region42: #{tpu_custom_call.1} parent=5 // pred_check_branch
        %1138 = sbr.rel (%p1136) target = $region44
      $region43: #{tpu_custom_call.1} parent=5 // pred_region
        %s1139 = ssub.s32 %s16, 2
        // Predicated region
        $region45: #{tpu_custom_call.1} parent=43 // pred_check
          %p1140 = pneg %p113
        $region46: #{tpu_custom_call.1} parent=43 // pred_check_branch
          %1142 = sbr.rel (%p1140) target = $region48
        $region47: #{tpu_custom_call.1} parent=43 // pred_region
          %s1143 = sand.u32 %s98, 1
          %s1144 = scalar_lea.sflag [#allocation4], %s1143
          %s1145 = sand.u32 %s98, 1
          %s1146 = smul.addr %s1145, 16
          %s1147 = scalar_lea.vmem [#allocation3], %s1146
          %1149 = dma.done %s1144, 256
        $region48: #{tpu_custom_call.1} parent=43 // pred_fallthru
          _
        // Predicated region
        $region49: #{tpu_custom_call.1} parent=43 // pred_check
          %p1150 = pneg %p139
        $region50: #{tpu_custom_call.1} parent=43 // pred_check_branch
          %1152 = sbr.rel (%p1150) target = $region52
        $region51: #{tpu_custom_call.1} parent=43 // pred_region
          %s1153 = sand.u32 %s124, 1
          %s1154 = scalar_lea.sflag [#allocation6], %s1153
          %s1155 = sand.u32 %s124, 1
          %s1156 = smul.addr %s1155, 4
          %s1157 = scalar_lea.vmem [#allocation5], %s1156
          %1159 = dma.done %s1154, 64
        $region52: #{tpu_custom_call.1} parent=43 // pred_fallthru
          _
      $region44: #{tpu_custom_call.1} parent=5 // pred_fallthru
        _
    $region6: #{tpu_custom_call.1} parent=1 // loop_footer
      %s20 = sadd.s32 1, %s16
    $region7: #{tpu_custom_call.1} parent=1 // loop_footer_branch
      %15 = sbr.rel target = $region3
    $region8: #{tpu_custom_call.1} parent=1 // loop_exit
      _
    %1160 = vsyncpa [#allocation4], 1
    %s1161 = scalar_lea.sflag [#allocation4], 1
    %1162 = vsyncpa %s1161, 1
    %1163 = vsyncpa [#allocation6], 1
    %s1164 = scalar_lea.sflag [#allocation6], 1
    %1165 = vsyncpa %s1164, 1

</llo_original>
